<compile_context>
chip_gen: v7x
topology: tpu7x:2x2x1
jax: 0.10.0
libtpu: 0.0.40
codegen_flags: <defaults>
</compile_context>

<pallas_src>
import functools
import math

import jax
import jax.numpy as jnp
from jax.experimental import pallas as pl
from jax.experimental.pallas import tpu as pltpu


T_SLICES = 10      # ClassificationNet sums over the first 10 time slices
LANE = 128         # TPU lane width: pad hidden / logit dims to this
SUBLANE = 8        # f32 sublane height: pad batch to a multiple of this


def _round_up(x, m):
    return (x + m - 1) // m * m


# ----------------------------------------------------------------------------
# Fused Pallas kernel: both 2-layer ReLU MLPs, averaged over T time slices.
# All operands are whole-array VMEM-resident (grid-less call, tiny footprint).
# ----------------------------------------------------------------------------
def _fused_classnet_kernel(xa_ref, aw1_ref, ab1_ref, aw2_ref, ab2_ref,
                           xv_ref, vw1_ref, vb1_ref, vw2_ref, vb2_ref,
                           aout_ref, vout_ref, *, n_t, b_pad):
    inv_t = 1.0 / n_t

    def two_layer_mean(x_ref, w1_ref, b1_ref, w2_ref, b2_ref, o_ref):
        # (n_t*b_pad, C) @ (C, Hp) -> ReLU -> @ (Hp, Kp) -> ReLU, f32 accumulate.
        h = jnp.dot(x_ref[...], w1_ref[...], preferred_element_type=jnp.float32)
        h = jnp.maximum(h + b1_ref[...], 0.0)
        y = jnp.dot(h.astype(w2_ref.dtype), w2_ref[...],
                    preferred_element_type=jnp.float32)
        y = jnp.maximum(y + b2_ref[...], 0.0)                  # (n_t*b_pad, Kp)
        # Mean over the n_t time slices.  Rows come in groups of b_pad (a
        # multiple of 8), so these static slices are vreg-aligned — pure VPU adds.
        acc = y[0:b_pad, :]
        for t in range(1, n_t):
            acc = acc + y[t * b_pad:(t + 1) * b_pad, :]
        o_ref[...] = acc * inv_t

    two_layer_mean(xa_ref, aw1_ref, ab1_ref, aw2_ref, ab2_ref, aout_ref)
    two_layer_mean(xv_ref, vw1_ref, vb1_ref, vw2_ref, vb2_ref, vout_ref)


# ----------------------------------------------------------------------------
# Wrapper-side layout / padding helpers
# ----------------------------------------------------------------------------
def _prep_features(feat, n_t, b_pad, c_pad, compute_dtype):
    """(B, C, T) -> (n_t * b_pad, c_pad), channel-last, time-major row groups."""
    B, C, _ = feat.shape
    x = feat[:, :, :n_t].astype(compute_dtype)       # cast first: halves transpose bytes
    x = jnp.transpose(x, (2, 0, 1))                  # (n_t, B, C)
    x = jnp.pad(x, ((0, 0), (0, b_pad - B), (0, c_pad - C)))
    return x.reshape(n_t * b_pad, c_pad)


def _prep_weights(w1, b1, w2, b2, c_pad, h_pad, k_pad, compute_dtype):
    """nn.Linear (out, in) weights -> lane-padded (in, out) kernel operands."""
    h, c_in = w1.shape
    k = w2.shape[0]
    w1p = jnp.zeros((c_pad, h_pad), compute_dtype).at[:c_in, :h].set(
        w1.T.astype(compute_dtype))
    b1p = jnp.zeros((1, h_pad), jnp.float32).at[:, :h].set(b1.astype(jnp.float32))
    w2p = jnp.zeros((h_pad, k_pad), compute_dtype).at[:h, :k].set(
        w2.T.astype(compute_dtype))
    b2p = jnp.zeros((1, k_pad), jnp.float32).at[:, :k].set(b2.astype(jnp.float32))
    return w1p, b1p, w2p, b2p


# ----------------------------------------------------------------------------
# Parameter init (xavier_normal_ weights, zero bias) — matches nn.init
# ----------------------------------------------------------------------------
def _xavier_normal(key, fan_in, fan_out):
    std = math.sqrt(2.0 / (fan_in + fan_out))
    # Stored as (out, in) like nn.Linear.weight.
    return std * jax.random.normal(key, (fan_out, fan_in), dtype=jnp.float32)


def init_classification_net(key, Vinput_size=512, Ainput_size=128,
                            output_size=64, kinds=28):
    k = jax.random.split(key, 4)
    return {
        # AudioClassificationNet
        "a_w1": _xavier_normal(k[0], Ainput_size, output_size),
        "a_b1": jnp.zeros((output_size,), jnp.float32),
        "a_w2": _xavier_normal(k[1], output_size, kinds),
        "a_b2": jnp.zeros((kinds,), jnp.float32),
        # VideoClassificationNet
        "v_w1": _xavier_normal(k[2], Vinput_size, output_size),
        "v_b1": jnp.zeros((output_size,), jnp.float32),
        "v_w2": _xavier_normal(k[3], output_size, kinds),
        "v_b2": jnp.zeros((kinds,), jnp.float32),
    }


# ----------------------------------------------------------------------------
# ClassificationNet.forward
# ----------------------------------------------------------------------------
def classification_net_forward(params, Vfeat, Afeat, training=True,
                               compute_dtype=jnp.bfloat16):
    """Vfeat: (B, Vinput_size, T>=10); Afeat: (B, Ainput_size, T>=10)."""
    B = Afeat.shape[0]
    kinds = params["a_w2"].shape[0]
    hidden = params["a_w1"].shape[0]

    b_pad = max(SUBLANE, _round_up(B, SUBLANE))
    h_pad = _round_up(hidden, LANE)
    k_pad = _round_up(kinds, LANE)
    ca_pad = _round_up(Afeat.shape[1], LANE)
    cv_pad = _round_up(Vfeat.shape[1], LANE)

    xa = _prep_features(Afeat, T_SLICES, b_pad, ca_pad, compute_dtype)
    xv = _prep_features(Vfeat, T_SLICES, b_pad, cv_pad, compute_dtype)

    aw1, ab1, aw2, ab2 = _prep_weights(params["a_w1"], params["a_b1"],
                                       params["a_w2"], params["a_b2"],
                                       ca_pad, h_pad, k_pad, compute_dtype)
    vw1, vb1, vw2, vb2 = _prep_weights(params["v_w1"], params["v_b1"],
                                       params["v_w2"], params["v_b2"],
                                       cv_pad, h_pad, k_pad, compute_dtype)

    m = T_SLICES * b_pad
    flops = 2 * m * (ca_pad * h_pad + cv_pad * h_pad + 2 * h_pad * k_pad)
    bytes_accessed = int(
        xa.size * xa.dtype.itemsize + xv.size * xv.dtype.itemsize
        + sum(w.size * w.dtype.itemsize
              for w in (aw1, ab1, aw2, ab2, vw1, vb1, vw2, vb2))
        + 2 * b_pad * k_pad * 4)

    kernel = functools.partial(_fused_classnet_kernel,
                               n_t=T_SLICES, b_pad=b_pad)

    alogits_p, vlogits_p = pl.pallas_call(
        kernel,
        out_shape=(jax.ShapeDtypeStruct((b_pad, k_pad), jnp.float32),
                   jax.ShapeDtypeStruct((b_pad, k_pad), jnp.float32)),
        cost_estimate=pl.CostEstimate(flops=flops, transcendentals=0,
                                      bytes_accessed=bytes_accessed),
    )(xa, aw1, ab1, aw2, ab2, xv, vw1, vb1, vw2, vb2)

    alogits = alogits_p[:B, :kinds]
    vlogits = vlogits_p[:B, :kinds]

    if training:
        return alogits, vlogits

    # Eval branch: argmax agreement -> [0, 1000] else [1000, 0]  (plain-JAX glue)
    a_pred = jnp.argmax(alogits, axis=1)
    v_pred = jnp.argmax(vlogits, axis=1)
    same = (a_pred == v_pred)
    return jnp.where(same[:, None],
                     jnp.array([0, 1000], jnp.int32)[None, :],
                     jnp.array([1000, 0], jnp.int32)[None, :])


# ----------------------------------------------------------------------------
if __name__ == "__main__":
    key = jax.random.PRNGKey(0)
    pk, vk, ak = jax.random.split(key, 3)

    B, T = 4, 10
    Vinput_size, Ainput_size, output_size = 512, 128, 64

    params = init_classification_net(pk, Vinput_size, Ainput_size, output_size)
    Vfeat = jax.random.normal(vk, (B, Vinput_size, T), dtype=jnp.float32)
    Afeat = jax.random.normal(ak, (B, Ainput_size, T), dtype=jnp.float32)

    fwd = jax.jit(classification_net_forward,
                  static_argnames=("training", "compute_dtype"))

    # plain-JAX reference (mirrors the PyTorch loop)
    def ref_mlp_avg(x, w1, b1, w2, b2):
        acc = 0.0
        for i in range(10):
            xi = x[:, :, i]
            h = jnp.maximum(xi @ w1.T + b1, 0.0)
            acc = acc + jnp.maximum(h @ w2.T + b2, 0.0)
        return acc / 10.0

    a_ref = ref_mlp_avg(Afeat, params["a_w1"], params["a_b1"],
                        params["a_w2"], params["a_b2"])
    v_ref = ref_mlp_avg(Vfeat, params["v_w1"], params["v_b1"],
                        params["v_w2"], params["v_b2"])

    # 1) exactness check with f32 compute
    a32, v32 = fwd(params, Vfeat, Afeat, training=True,
                   compute_dtype=jnp.float32)
    jax.block_until_ready((a32, v32))
    assert a32.shape == (B, 28) and v32.shape == (B, 28)
    assert jnp.allclose(a32, a_ref, atol=1e-4, rtol=1e-4)
    assert jnp.allclose(v32, v_ref, atol=1e-4, rtol=1e-4)

    # 2) default fast path: bf16 inputs/weights, f32 accumulation
    a16, v16 = fwd(params, Vfeat, Afeat, training=True)
    jax.block_until_ready((a16, v16))
    assert jnp.allclose(a16, a_ref, atol=5e-2, rtol=5e-2)
    assert jnp.allclose(v16, v_ref, atol=5e-2, rtol=5e-2)

    # 3) eval-mode branch
    eval_out = fwd(params, Vfeat, Afeat, training=False)
    jax.block_until_ready(eval_out)
    assert eval_out.shape == (B, 2)

    print("KERNEL_OK")
</pallas_src>

<mosaic_0001>
module attributes {stable_mosaic.version = 11 : i64} {
  func.func @_fused_classnet_kernel(%arg0: memref<80x128xf32, #tpu.memory_space<vmem>>, %arg1: memref<128x128xf32, #tpu.memory_space<vmem>>, %arg2: memref<1x128xf32, #tpu.memory_space<vmem>>, %arg3: memref<128x128xf32, #tpu.memory_space<vmem>>, %arg4: memref<1x128xf32, #tpu.memory_space<vmem>>, %arg5: memref<80x512xf32, #tpu.memory_space<vmem>>, %arg6: memref<512x128xf32, #tpu.memory_space<vmem>>, %arg7: memref<1x128xf32, #tpu.memory_space<vmem>>, %arg8: memref<128x128xf32, #tpu.memory_space<vmem>>, %arg9: memref<1x128xf32, #tpu.memory_space<vmem>>, %arg10: memref<8x128xf32, #tpu.memory_space<vmem>>, %arg11: memref<8x128xf32, #tpu.memory_space<vmem>>) attributes {dimension_semantics = [], scalar_prefetch = 0 : i64, scratch_operands = 0 : i64, tpu.core_type = #tpu.core_type<tc>} {
    %c0 = arith.constant 0 : index
    %c0_0 = arith.constant 0 : index
    %0 = vector.load %arg0[%c0, %c0_0] : memref<80x128xf32, #tpu.memory_space<vmem>>, vector<80x128xf32>
    %c0_1 = arith.constant 0 : index
    %c0_2 = arith.constant 0 : index
    %1 = vector.load %arg1[%c0_1, %c0_2] : memref<128x128xf32, #tpu.memory_space<vmem>>, vector<128x128xf32>
    %cst = arith.constant dense<0.000000e+00> : vector<80x128xf32>
    %2 = tpu.matmul %0, %1, %cst {dimension_numbers = #tpu.dot_dimension_numbers<[1], [0], [0], [1], [0, 0, 1, 1], [], []>} : vector<80x128xf32>, vector<128x128xf32>, vector<80x128xf32> -> vector<80x128xf32>
    %c0_3 = arith.constant 0 : index
    %c0_4 = arith.constant 0 : index
    %3 = vector.load %arg2[%c0_3, %c0_4] : memref<1x128xf32, #tpu.memory_space<vmem>>, vector<1x128xf32>
    %4 = vector.broadcast %3 : vector<1x128xf32> to vector<80x128xf32>
    %5 = arith.addf %2, %4 : vector<80x128xf32>
    %cst_5 = arith.constant 0.000000e+00 : f32
    %6 = vector.broadcast %cst_5 : f32 to vector<80x128xf32>
    %7 = arith.maximumf %5, %6 : vector<80x128xf32>
    %c0_6 = arith.constant 0 : index
    %c0_7 = arith.constant 0 : index
    %8 = vector.load %arg3[%c0_6, %c0_7] : memref<128x128xf32, #tpu.memory_space<vmem>>, vector<128x128xf32>
    %cst_8 = arith.constant dense<0.000000e+00> : vector<80x128xf32>
    %9 = tpu.matmul %7, %8, %cst_8 {dimension_numbers = #tpu.dot_dimension_numbers<[1], [0], [0], [1], [0, 0, 1, 1], [], []>} : vector<80x128xf32>, vector<128x128xf32>, vector<80x128xf32> -> vector<80x128xf32>
    %c0_9 = arith.constant 0 : index
    %c0_10 = arith.constant 0 : index
    %10 = vector.load %arg4[%c0_9, %c0_10] : memref<1x128xf32, #tpu.memory_space<vmem>>, vector<1x128xf32>
    %11 = vector.broadcast %10 : vector<1x128xf32> to vector<80x128xf32>
    %12 = arith.addf %9, %11 : vector<80x128xf32>
    %cst_11 = arith.constant 0.000000e+00 : f32
    %13 = vector.broadcast %cst_11 : f32 to vector<80x128xf32>
    %14 = arith.maximumf %12, %13 : vector<80x128xf32>
    %15 = vector.extract_strided_slice %14 {offsets = [0, 0], sizes = [8, 128], strides = [1, 1]} : vector<80x128xf32> to vector<8x128xf32>
    %16 = vector.extract_strided_slice %14 {offsets = [8, 0], sizes = [8, 128], strides = [1, 1]} : vector<80x128xf32> to vector<8x128xf32>
    %17 = arith.addf %15, %16 : vector<8x128xf32>
    %18 = vector.extract_strided_slice %14 {offsets = [16, 0], sizes = [8, 128], strides = [1, 1]} : vector<80x128xf32> to vector<8x128xf32>
    %19 = arith.addf %17, %18 : vector<8x128xf32>
    %20 = vector.extract_strided_slice %14 {offsets = [24, 0], sizes = [8, 128], strides = [1, 1]} : vector<80x128xf32> to vector<8x128xf32>
    %21 = arith.addf %19, %20 : vector<8x128xf32>
    %22 = vector.extract_strided_slice %14 {offsets = [32, 0], sizes = [8, 128], strides = [1, 1]} : vector<80x128xf32> to vector<8x128xf32>
    %23 = arith.addf %21, %22 : vector<8x128xf32>
    %24 = vector.extract_strided_slice %14 {offsets = [40, 0], sizes = [8, 128], strides = [1, 1]} : vector<80x128xf32> to vector<8x128xf32>
    %25 = arith.addf %23, %24 : vector<8x128xf32>
    %26 = vector.extract_strided_slice %14 {offsets = [48, 0], sizes = [8, 128], strides = [1, 1]} : vector<80x128xf32> to vector<8x128xf32>
    %27 = arith.addf %25, %26 : vector<8x128xf32>
    %28 = vector.extract_strided_slice %14 {offsets = [56, 0], sizes = [8, 128], strides = [1, 1]} : vector<80x128xf32> to vector<8x128xf32>
    %29 = arith.addf %27, %28 : vector<8x128xf32>
    %30 = vector.extract_strided_slice %14 {offsets = [64, 0], sizes = [8, 128], strides = [1, 1]} : vector<80x128xf32> to vector<8x128xf32>
    %31 = arith.addf %29, %30 : vector<8x128xf32>
    %32 = vector.extract_strided_slice %14 {offsets = [72, 0], sizes = [8, 128], strides = [1, 1]} : vector<80x128xf32> to vector<8x128xf32>
    %33 = arith.addf %31, %32 : vector<8x128xf32>
    %cst_12 = arith.constant 1.000000e-01 : f32
    %34 = vector.broadcast %cst_12 : f32 to vector<8x128xf32>
    %35 = arith.mulf %33, %34 : vector<8x128xf32>
    %c0_13 = arith.constant 0 : index
    %c0_14 = arith.constant 0 : index
    %36 = vector.load %arg10[%c0_13, %c0_14] : memref<8x128xf32, #tpu.memory_space<vmem>>, vector<8x128xf32>
    tpu.vector_store %arg10[%c0_13, %c0_14], %35 {strides = array<i32>} : memref<8x128xf32, #tpu.memory_space<vmem>>, vector<8x128xf32>,
    %c0_15 = arith.constant 0 : index
    %c0_16 = arith.constant 0 : index
    %37 = vector.load %arg5[%c0_15, %c0_16] : memref<80x512xf32, #tpu.memory_space<vmem>>, vector<80x512xf32>
    %c0_17 = arith.constant 0 : index
    %c0_18 = arith.constant 0 : index
    %38 = vector.load %arg6[%c0_17, %c0_18] : memref<512x128xf32, #tpu.memory_space<vmem>>, vector<512x128xf32>
    %cst_19 = arith.constant dense<0.000000e+00> : vector<80x128xf32>
    %39 = tpu.matmul %37, %38, %cst_19 {dimension_numbers = #tpu.dot_dimension_numbers<[1], [0], [0], [1], [0, 0, 1, 1], [], []>} : vector<80x512xf32>, vector<512x128xf32>, vector<80x128xf32> -> vector<80x128xf32>
    %c0_20 = arith.constant 0 : index
    %c0_21 = arith.constant 0 : index
    %40 = vector.load %arg7[%c0_20, %c0_21] : memref<1x128xf32, #tpu.memory_space<vmem>>, vector<1x128xf32>
    %41 = vector.broadcast %40 : vector<1x128xf32> to vector<80x128xf32>
    %42 = arith.addf %39, %41 : vector<80x128xf32>
    %cst_22 = arith.constant 0.000000e+00 : f32
    %43 = vector.broadcast %cst_22 : f32 to vector<80x128xf32>
    %44 = arith.maximumf %42, %43 : vector<80x128xf32>
    %c0_23 = arith.constant 0 : index
    %c0_24 = arith.constant 0 : index
    %45 = vector.load %arg8[%c0_23, %c0_24] : memref<128x128xf32, #tpu.memory_space<vmem>>, vector<128x128xf32>
    %cst_25 = arith.constant dense<0.000000e+00> : vector<80x128xf32>
    %46 = tpu.matmul %44, %45, %cst_25 {dimension_numbers = #tpu.dot_dimension_numbers<[1], [0], [0], [1], [0, 0, 1, 1], [], []>} : vector<80x128xf32>, vector<128x128xf32>, vector<80x128xf32> -> vector<80x128xf32>
    %c0_26 = arith.constant 0 : index
    %c0_27 = arith.constant 0 : index
    %47 = vector.load %arg9[%c0_26, %c0_27] : memref<1x128xf32, #tpu.memory_space<vmem>>, vector<1x128xf32>
    %48 = vector.broadcast %47 : vector<1x128xf32> to vector<80x128xf32>
    %49 = arith.addf %46, %48 : vector<80x128xf32>
    %cst_28 = arith.constant 0.000000e+00 : f32
    %50 = vector.broadcast %cst_28 : f32 to vector<80x128xf32>
    %51 = arith.maximumf %49, %50 : vector<80x128xf32>
    %52 = vector.extract_strided_slice %51 {offsets = [0, 0], sizes = [8, 128], strides = [1, 1]} : vector<80x128xf32> to vector<8x128xf32>
    %53 = vector.extract_strided_slice %51 {offsets = [8, 0], sizes = [8, 128], strides = [1, 1]} : vector<80x128xf32> to vector<8x128xf32>
    %54 = arith.addf %52, %53 : vector<8x128xf32>
    %55 = vector.extract_strided_slice %51 {offsets = [16, 0], sizes = [8, 128], strides = [1, 1]} : vector<80x128xf32> to vector<8x128xf32>
    %56 = arith.addf %54, %55 : vector<8x128xf32>
    %57 = vector.extract_strided_slice %51 {offsets = [24, 0], sizes = [8, 128], strides = [1, 1]} : vector<80x128xf32> to vector<8x128xf32>
    %58 = arith.addf %56, %57 : vector<8x128xf32>
    %59 = vector.extract_strided_slice %51 {offsets = [32, 0], sizes = [8, 128], strides = [1, 1]} : vector<80x128xf32> to vector<8x128xf32>
    %60 = arith.addf %58, %59 : vector<8x128xf32>
    %61 = vector.extract_strided_slice %51 {offsets = [40, 0], sizes = [8, 128], strides = [1, 1]} : vector<80x128xf32> to vector<8x128xf32>
    %62 = arith.addf %60, %61 : vector<8x128xf32>
    %63 = vector.extract_strided_slice %51 {offsets = [48, 0], sizes = [8, 128], strides = [1, 1]} : vector<80x128xf32> to vector<8x128xf32>
    %64 = arith.addf %62, %63 : vector<8x128xf32>
    %65 = vector.extract_strided_slice %51 {offsets = [56, 0], sizes = [8, 128], strides = [1, 1]} : vector<80x128xf32> to vector<8x128xf32>
    %66 = arith.addf %64, %65 : vector<8x128xf32>
    %67 = vector.extract_strided_slice %51 {offsets = [64, 0], sizes = [8, 128], strides = [1, 1]} : vector<80x128xf32> to vector<8x128xf32>
    %68 = arith.addf %66, %67 : vector<8x128xf32>
    %69 = vector.extract_strided_slice %51 {offsets = [72, 0], sizes = [8, 128], strides = [1, 1]} : vector<80x128xf32> to vector<8x128xf32>
    %70 = arith.addf %68, %69 : vector<8x128xf32>
    %cst_29 = arith.constant 1.000000e-01 : f32
    %71 = vector.broadcast %cst_29 : f32 to vector<8x128xf32>
    %72 = arith.mulf %70, %71 : vector<8x128xf32>
    %c0_30 = arith.constant 0 : index
    %c0_31 = arith.constant 0 : index
    %73 = vector.load %arg11[%c0_30, %c0_31] : memref<8x128xf32, #tpu.memory_space<vmem>>, vector<8x128xf32>
    tpu.vector_store %arg11[%c0_30, %c0_31], %72 {strides = array<i32>} : memref<8x128xf32, #tpu.memory_space<vmem>>, vector<8x128xf32>,
    return
  }
}

</mosaic_0001>

<llo_original>
// kernel: classification_net_forward.1
$region0: #{classification_net_forward.1}
  #allocation0 [shape = 'u32[]', space=smem, size = 0x4, offset = 0x4, fixed_abs, tag = 'smem constant byte address 0x4 - core index']
  #allocation1 [shape = 'u32[144,128]{1,0:T(1,128)}', space=vmem, size = 0x12000, scoped, tag = 'internal scratch']
  %s0 = inlined_call_operand.vmem [shape: f32[80,128], index: 0, kind: input, shape index: {}]
  %s1 = inlined_call_operand.vmem [shape: f32[128,128], index: 1, kind: input, shape index: {}]
  %s2 = inlined_call_operand.vmem [shape: f32[1,128], index: 2, kind: input, shape index: {}]
  %s3 = inlined_call_operand.vmem [shape: f32[128,128], index: 3, kind: input, shape index: {}]
  %s4 = inlined_call_operand.vmem [shape: f32[1,128], index: 4, kind: input, shape index: {}]
  %s5 = inlined_call_operand.vmem [shape: f32[80,512], index: 5, kind: input, shape index: {}]
  %s6 = inlined_call_operand.vmem [shape: f32[512,128], index: 6, kind: input, shape index: {}]
  %s7 = inlined_call_operand.vmem [shape: f32[1,128], index: 7, kind: input, shape index: {}]
  %s8 = inlined_call_operand.vmem [shape: f32[128,128], index: 8, kind: input, shape index: {}]
  %s9 = inlined_call_operand.vmem [shape: f32[1,128], index: 9, kind: input, shape index: {}]
  %s10 = inlined_call_operand.vmem [shape: f32[8,128], index: 10, kind: output, shape index: {0}]
  %s11 = inlined_call_operand.vmem [shape: f32[8,128], index: 11, kind: output, shape index: {1}]
  %12 = xla_tuple %s10, %s11
  %s13 = sld [smem:[#allocation0]]
  $region58: #{classification_net_forward.1} parent=0
    _
  %s15 = ssub.s32 1, %s13
  %s16 = scalar_select 0, %s15, %s13
  // Predicated region
  $region2: #{classification_net_forward.1} parent=0 // pred_check
    _
  $region3: #{classification_net_forward.1} parent=0 // pred_check_branch
    %18 = sbr.rel (0) target = $region5
  $region4: #{classification_net_forward.1} parent=0 // pred_region
    _
  $region5: #{classification_net_forward.1} parent=0 // pred_fallthru
    _
  // Predicated region
  $region6: #{classification_net_forward.1} parent=0 // pred_check
    _
  $region7: #{classification_net_forward.1} parent=0 // pred_check_branch
    %20 = sbr.rel (0) target = $region9
  $region8: #{classification_net_forward.1} parent=0 // pred_region
    _
  $region9: #{classification_net_forward.1} parent=0 // pred_fallthru
    _
  // Predicated region
  $region10: #{classification_net_forward.1} parent=0 // pred_check
    _
  $region11: #{classification_net_forward.1} parent=0 // pred_check_branch
    %22 = sbr.rel (0) target = $region13
  $region12: #{classification_net_forward.1} parent=0 // pred_region
    _
  $region13: #{classification_net_forward.1} parent=0 // pred_fallthru
    _
  // Predicated region
  $region14: #{classification_net_forward.1} parent=0 // pred_check
    _
  $region15: #{classification_net_forward.1} parent=0 // pred_check_branch
    %24 = sbr.rel (0) target = $region17
  $region16: #{classification_net_forward.1} parent=0 // pred_region
    _
  $region17: #{classification_net_forward.1} parent=0 // pred_fallthru
    _
  // Predicated region
  $region18: #{classification_net_forward.1} parent=0 // pred_check
    _
  $region19: #{classification_net_forward.1} parent=0 // pred_check_branch
    %26 = sbr.rel (0) target = $region21
  $region20: #{classification_net_forward.1} parent=0 // pred_region
    _
  $region21: #{classification_net_forward.1} parent=0 // pred_fallthru
    _
  // Predicated region
  $region22: #{classification_net_forward.1} parent=0 // pred_check
    _
  $region23: #{classification_net_forward.1} parent=0 // pred_check_branch
    %28 = sbr.rel (0) target = $region25
  $region24: #{classification_net_forward.1} parent=0 // pred_region
    _
  $region25: #{classification_net_forward.1} parent=0 // pred_fallthru
    _
  // Predicated region
  $region26: #{classification_net_forward.1} parent=0 // pred_check
    _
  $region27: #{classification_net_forward.1} parent=0 // pred_check_branch
    %30 = sbr.rel (0) target = $region29
  $region28: #{classification_net_forward.1} parent=0 // pred_region
    _
  $region29: #{classification_net_forward.1} parent=0 // pred_fallthru
    _
  // Predicated region
  $region30: #{classification_net_forward.1} parent=0 // pred_check
    _
  $region31: #{classification_net_forward.1} parent=0 // pred_check_branch
    %32 = sbr.rel (0) target = $region33
  $region32: #{classification_net_forward.1} parent=0 // pred_region
    _
  $region33: #{classification_net_forward.1} parent=0 // pred_fallthru
    _
  // Predicated region
  $region34: #{classification_net_forward.1} parent=0 // pred_check
    _
  $region35: #{classification_net_forward.1} parent=0 // pred_check_branch
    %34 = sbr.rel (0) target = $region37
  $region36: #{classification_net_forward.1} parent=0 // pred_region
    _
  $region37: #{classification_net_forward.1} parent=0 // pred_fallthru
    _
  // Predicated region
  $region38: #{classification_net_forward.1} parent=0 // pred_check
    _
  $region39: #{classification_net_forward.1} parent=0 // pred_check_branch
    %36 = sbr.rel (0) target = $region41
  $region40: #{classification_net_forward.1} parent=0 // pred_region
    _
  $region41: #{classification_net_forward.1} parent=0 // pred_fallthru
    _
  %v37 = vld [vmem:[%s0] sm:$0xff]
  %v38 = vld [vmem:[%s0 + $0x8] sm:$0xff]
  %v39 = vld [vmem:[%s0 + $0x10] sm:$0xff]
  %v40 = vld [vmem:[%s0 + $0x18] sm:$0xff]
  %v41 = vld [vmem:[%s0 + $0x20] sm:$0xff]
  %v42 = vld [vmem:[%s0 + $0x28] sm:$0xff]
  %v43 = vld [vmem:[%s0 + $0x30] sm:$0xff]
  %v44 = vld [vmem:[%s0 + $0x38] sm:$0xff]
  %v45 = vld [vmem:[%s0 + $0x40] sm:$0xff]
  %v46 = vld [vmem:[%s0 + $0x48] sm:$0xff]
  %v47 = vld [vmem:[%s1] sm:$0xff]
  %v48 = vld [vmem:[%s1 + $0x8] sm:$0xff]
  %v49 = vld [vmem:[%s1 + $0x10] sm:$0xff]
  %v50 = vld [vmem:[%s1 + $0x18] sm:$0xff]
  %v51 = vld [vmem:[%s1 + $0x20] sm:$0xff]
  %v52 = vld [vmem:[%s1 + $0x28] sm:$0xff]
  %v53 = vld [vmem:[%s1 + $0x30] sm:$0xff]
  %v54 = vld [vmem:[%s1 + $0x38] sm:$0xff]
  %v55 = vld [vmem:[%s1 + $0x40] sm:$0xff]
  %v56 = vld [vmem:[%s1 + $0x48] sm:$0xff]
  %v57 = vld [vmem:[%s1 + $0x50] sm:$0xff]
  %v58 = vld [vmem:[%s1 + $0x58] sm:$0xff]
  %v59 = vld [vmem:[%s1 + $0x60] sm:$0xff]
  %v60 = vld [vmem:[%s1 + $0x68] sm:$0xff]
  %v61 = vld [vmem:[%s1 + $0x70] sm:$0xff]
  %v62 = vld [vmem:[%s1 + $0x78] sm:$0xff]
  %v63 = vld [vmem:[%s2] sm:$0x1]
  %v65 = vlaneseq
  %v66 = vshrl.u32 %v65, 7
  %v67 = vsub.s32 0, %v66
  %v68 = vrot.slane %v63, %v67
  %70 = vmatprep.subr.mxu0 0.0
  %71 = vmatpush1.msra.mxu0 %v47
  %72 = vmatprep.subr.mxu0 0.0
  %73 = vmatpush1.msra.mxu0 %v48
  %74 = vmatprep.subr.mxu0 0.0
  %75 = vmatpush1.msra.mxu0 %v49
  %76 = vmatprep.subr.mxu0 0.0
  %77 = vmatpush1.msra.mxu0 %v50
  %78 = vmatprep.subr.mxu0 0.0
  %79 = vmatpush1.msra.mxu0 %v51
  %80 = vmatprep.subr.mxu0 0.0
  %81 = vmatpush1.msra.mxu0 %v52
  %82 = vmatprep.subr.mxu0 0.0
  %83 = vmatpush1.msra.mxu0 %v53
  %84 = vmatprep.subr.mxu0 0.0
  %85 = vmatpush1.msra.mxu0 %v54
  %86 = vmatprep.subr.mxu0 0.0
  %87 = vmatpush1.msra.mxu0 %v55
  %88 = vmatprep.subr.mxu0 0.0
  %89 = vmatpush1.msra.mxu0 %v56
  %90 = vmatprep.subr.mxu0 0.0
  %91 = vmatpush1.msra.mxu0 %v57
  %92 = vmatprep.subr.mxu0 0.0
  %93 = vmatpush1.msra.mxu0 %v58
  %94 = vmatprep.subr.mxu0 0.0
  %95 = vmatpush1.msra.mxu0 %v59
  %96 = vmatprep.subr.mxu0 0.0
  %97 = vmatpush1.msra.mxu0 %v60
  %98 = vmatprep.subr.mxu0 0.0
  %99 = vmatpush1.msra.mxu0 %v61
  %100 = vmatprep.subr.mxu0 0.0
  %101 = vmatpush1.msra.mxu0 %v62
  %102 = vmatprep.subr.mxu0 0.0
  %103 = vmatpush1.msra.mxu0 0.0
  %104 = vmatprep.subr.mxu0 0.0
  %105 = vmatpush1.msra.mxu0 0.0
  %106 = vmatprep.subr.mxu0 0.0
  %107 = vmatpush1.msra.mxu0 0.0
  %108 = vmatprep.subr.mxu0 0.0
  %109 = vmatpush1.msra.mxu0 0.0
  %110 = vmatprep.subr.mxu0 0.0
  %111 = vmatpush1.msra.mxu0 0.0
  %112 = vmatprep.subr.mxu0 0.0
  %113 = vmatpush1.msra.mxu0 0.0
  %114 = vmatprep.subr.mxu0 0.0
  %115 = vmatpush1.msra.mxu0 0.0
  %116 = vmatprep.subr.mxu0 0.0
  %117 = vmatpush1.msra.mxu0 0.0
  %118 = vmatprep.subr.mxu0 0.0
  %119 = vmatpush1.msra.mxu0 0.0
  %120 = vmatprep.subr.mxu0 0.0
  %121 = vmatpush1.msra.mxu0 0.0
  %122 = vmatprep.subr.mxu0 0.0
  %123 = vmatpush1.msra.mxu0 0.0
  %124 = vmatprep.subr.mxu0 0.0
  %125 = vmatpush1.msra.mxu0 0.0
  %126 = vmatprep.subr.mxu0 0.0
  %127 = vmatpush1.msra.mxu0 0.0
  %128 = vmatprep.subr.mxu0 0.0
  %129 = vmatpush1.msra.mxu0 0.0
  %130 = vmatprep.subr.mxu0 0.0
  %131 = vmatpush1.msra.mxu0 0.0
  %132 = vmatprep.subr.mxu0 0.0
  %133 = vmatpush1.msra.mxu0 0.0
  %134 = vmatprep.mubr.f32.mxu0 0.0
  %135 = vmatmul.mubr.f32.gmra.mrb[0].mxu0 %v37
  %v136 = vpop.f32.mrb[0].mxu0
  %v137 = vadd.f32 %v68, %v136
  %v138 = vpop.f32.mrb[0].mxu0
  %139 = vmatprep.mubr.f32.mxu0 0.0
  %140 = vmatmul.mubr.f32.gmra.mrb[0].mxu0 %v38
  %v141 = vpop.f32.mrb[0].mxu0
  %v142 = vadd.f32 %v68, %v141
  %v143 = vpop.f32.mrb[0].mxu0
  %144 = vmatprep.mubr.f32.mxu0 0.0
  %145 = vmatmul.mubr.f32.gmra.mrb[0].mxu0 %v39
  %v146 = vpop.f32.mrb[0].mxu0
  %v147 = vadd.f32 %v68, %v146
  %v148 = vpop.f32.mrb[0].mxu0
  %149 = vmatprep.mubr.f32.mxu0 0.0
  %150 = vmatmul.mubr.f32.gmra.mrb[0].mxu0 %v40
  %v151 = vpop.f32.mrb[0].mxu0
  %v152 = vadd.f32 %v68, %v151
  %v153 = vpop.f32.mrb[0].mxu0
  %154 = vmatprep.mubr.f32.mxu0 0.0
  %155 = vmatmul.mubr.f32.gmra.mrb[0].mxu0 %v41
  %v156 = vpop.f32.mrb[0].mxu0
  %v157 = vadd.f32 %v68, %v156
  %v158 = vpop.f32.mrb[0].mxu0
  %159 = vmatprep.mubr.f32.mxu0 0.0
  %160 = vmatmul.mubr.f32.gmra.mrb[0].mxu0 %v42
  %v161 = vpop.f32.mrb[0].mxu0
  %v162 = vadd.f32 %v68, %v161
  %v163 = vpop.f32.mrb[0].mxu0
  %164 = vmatprep.mubr.f32.mxu0 0.0
  %165 = vmatmul.mubr.f32.gmra.mrb[0].mxu0 %v43
  %v166 = vpop.f32.mrb[0].mxu0
  %v167 = vadd.f32 %v68, %v166
  %v168 = vpop.f32.mrb[0].mxu0
  %169 = vmatprep.mubr.f32.mxu0 0.0
  %170 = vmatmul.mubr.f32.gmra.mrb[0].mxu0 %v44
  %v171 = vpop.f32.mrb[0].mxu0
  %v172 = vadd.f32 %v68, %v171
  %v173 = vpop.f32.mrb[0].mxu0
  %174 = vmatprep.mubr.f32.mxu0 0.0
  %175 = vmatmul.mubr.f32.gmra.mrb[0].mxu0 %v45
  %v176 = vpop.f32.mrb[0].mxu0
  %v177 = vadd.f32 %v68, %v176
  %v178 = vpop.f32.mrb[0].mxu0
  %179 = vmatprep.mubr.f32.mxu0 0.0
  %180 = vmatmul.mubr.f32.gmra.mrb[0].mxu0 %v46
  %v181 = vpop.f32.mrb[0].mxu0
  %v182 = vadd.f32 %v68, %v181
  %v183 = vpop.f32.mrb[0].mxu0
  %184 = vdwg.mxu0
  %v185 = vmax.f32 %v137, 0.0
  %v186 = vmax.f32 %v142, 0.0
  %v187 = vmax.f32 %v147, 0.0
  %v188 = vmax.f32 %v152, 0.0
  %v189 = vmax.f32 %v157, 0.0
  %v190 = vmax.f32 %v162, 0.0
  %v191 = vmax.f32 %v167, 0.0
  %v192 = vmax.f32 %v172, 0.0
  %v193 = vmax.f32 %v177, 0.0
  %v194 = vmax.f32 %v182, 0.0
  %v195 = vld [vmem:[%s3] sm:$0xff]
  %v196 = vld [vmem:[%s3 + $0x8] sm:$0xff]
  %v197 = vld [vmem:[%s3 + $0x10] sm:$0xff]
  %v198 = vld [vmem:[%s3 + $0x18] sm:$0xff]
  %v199 = vld [vmem:[%s3 + $0x20] sm:$0xff]
  %v200 = vld [vmem:[%s3 + $0x28] sm:$0xff]
  %v201 = vld [vmem:[%s3 + $0x30] sm:$0xff]
  %v202 = vld [vmem:[%s3 + $0x38] sm:$0xff]
  %v203 = vld [vmem:[%s3 + $0x40] sm:$0xff]
  %v204 = vld [vmem:[%s3 + $0x48] sm:$0xff]
  %v205 = vld [vmem:[%s3 + $0x50] sm:$0xff]
  %v206 = vld [vmem:[%s3 + $0x58] sm:$0xff]
  %v207 = vld [vmem:[%s3 + $0x60] sm:$0xff]
  %v208 = vld [vmem:[%s3 + $0x68] sm:$0xff]
  %v209 = vld [vmem:[%s3 + $0x70] sm:$0xff]
  %v210 = vld [vmem:[%s3 + $0x78] sm:$0xff]
  %v211 = vld [vmem:[%s4] sm:$0x1]
  %v213 = vlaneseq
  %v214 = vshrl.u32 %v213, 7
  %v215 = vsub.s32 0, %v214
  %v216 = vrot.slane %v211, %v215
  %218 = vmatprep.subr.mxu0 0.0
  %219 = vmatpush1.msra.mxu0 %v195
  %220 = vmatprep.subr.mxu0 0.0
  %221 = vmatpush1.msra.mxu0 %v196
  %222 = vmatprep.subr.mxu0 0.0
  %223 = vmatpush1.msra.mxu0 %v197
  %224 = vmatprep.subr.mxu0 0.0
  %225 = vmatpush1.msra.mxu0 %v198
  %226 = vmatprep.subr.mxu0 0.0
  %227 = vmatpush1.msra.mxu0 %v199
  %228 = vmatprep.subr.mxu0 0.0
  %229 = vmatpush1.msra.mxu0 %v200
  %230 = vmatprep.subr.mxu0 0.0
  %231 = vmatpush1.msra.mxu0 %v201
  %232 = vmatprep.subr.mxu0 0.0
  %233 = vmatpush1.msra.mxu0 %v202
  %234 = vmatprep.subr.mxu0 0.0
  %235 = vmatpush1.msra.mxu0 %v203
  %236 = vmatprep.subr.mxu0 0.0
  %237 = vmatpush1.msra.mxu0 %v204
  %238 = vmatprep.subr.mxu0 0.0
  %239 = vmatpush1.msra.mxu0 %v205
  %240 = vmatprep.subr.mxu0 0.0
  %241 = vmatpush1.msra.mxu0 %v206
  %242 = vmatprep.subr.mxu0 0.0
  %243 = vmatpush1.msra.mxu0 %v207
  %244 = vmatprep.subr.mxu0 0.0
  %245 = vmatpush1.msra.mxu0 %v208
  %246 = vmatprep.subr.mxu0 0.0
  %247 = vmatpush1.msra.mxu0 %v209
  %248 = vmatprep.subr.mxu0 0.0
  %249 = vmatpush1.msra.mxu0 %v210
  %250 = vmatprep.subr.mxu0 0.0
  %251 = vmatpush1.msra.mxu0 0.0
  %252 = vmatprep.subr.mxu0 0.0
  %253 = vmatpush1.msra.mxu0 0.0
  %254 = vmatprep.subr.mxu0 0.0
  %255 = vmatpush1.msra.mxu0 0.0
  %256 = vmatprep.subr.mxu0 0.0
  %257 = vmatpush1.msra.mxu0 0.0
  %258 = vmatprep.subr.mxu0 0.0
  %259 = vmatpush1.msra.mxu0 0.0
  %260 = vmatprep.subr.mxu0 0.0
  %261 = vmatpush1.msra.mxu0 0.0
  %262 = vmatprep.subr.mxu0 0.0
  %263 = vmatpush1.msra.mxu0 0.0
  %264 = vmatprep.subr.mxu0 0.0
  %265 = vmatpush1.msra.mxu0 0.0
  %266 = vmatprep.subr.mxu0 0.0
  %267 = vmatpush1.msra.mxu0 0.0
  %268 = vmatprep.subr.mxu0 0.0
  %269 = vmatpush1.msra.mxu0 0.0
  %270 = vmatprep.subr.mxu0 0.0
  %271 = vmatpush1.msra.mxu0 0.0
  %272 = vmatprep.subr.mxu0 0.0
  %273 = vmatpush1.msra.mxu0 0.0
  %274 = vmatprep.subr.mxu0 0.0
  %275 = vmatpush1.msra.mxu0 0.0
  %276 = vmatprep.subr.mxu0 0.0
  %277 = vmatpush1.msra.mxu0 0.0
  %278 = vmatprep.subr.mxu0 0.0
  %279 = vmatpush1.msra.mxu0 0.0
  %280 = vmatprep.subr.mxu0 0.0
  %281 = vmatpush1.msra.mxu0 0.0
  %282 = vmatprep.mubr.f32.mxu0 0.0
  %283 = vmatmul.mubr.f32.gmra.mrb[0].mxu0 %v185
  %v284 = vpop.f32.mrb[0].mxu0
  %v285 = vadd.f32 %v216, %v284
  %v286 = vpop.f32.mrb[0].mxu0
  %287 = vmatprep.mubr.f32.mxu0 0.0
  %288 = vmatmul.mubr.f32.gmra.mrb[0].mxu0 %v186
  %v289 = vpop.f32.mrb[0].mxu0
  %v290 = vadd.f32 %v216, %v289
  %v291 = vpop.f32.mrb[0].mxu0
  %292 = vmatprep.mubr.f32.mxu0 0.0
  %293 = vmatmul.mubr.f32.gmra.mrb[0].mxu0 %v187
  %v294 = vpop.f32.mrb[0].mxu0
  %v295 = vadd.f32 %v216, %v294
  %v296 = vpop.f32.mrb[0].mxu0
  %297 = vmatprep.mubr.f32.mxu0 0.0
  %298 = vmatmul.mubr.f32.gmra.mrb[0].mxu0 %v188
  %v299 = vpop.f32.mrb[0].mxu0
  %v300 = vadd.f32 %v216, %v299
  %v301 = vpop.f32.mrb[0].mxu0
  %302 = vmatprep.mubr.f32.mxu0 0.0
  %303 = vmatmul.mubr.f32.gmra.mrb[0].mxu0 %v189
  %v304 = vpop.f32.mrb[0].mxu0
  %v305 = vadd.f32 %v216, %v304
  %v306 = vpop.f32.mrb[0].mxu0
  %307 = vmatprep.mubr.f32.mxu0 0.0
  %308 = vmatmul.mubr.f32.gmra.mrb[0].mxu0 %v190
  %v309 = vpop.f32.mrb[0].mxu0
  %v310 = vadd.f32 %v216, %v309
  %v311 = vpop.f32.mrb[0].mxu0
  %312 = vmatprep.mubr.f32.mxu0 0.0
  %313 = vmatmul.mubr.f32.gmra.mrb[0].mxu0 %v191
  %v314 = vpop.f32.mrb[0].mxu0
  %v315 = vadd.f32 %v216, %v314
  %v316 = vpop.f32.mrb[0].mxu0
  %317 = vmatprep.mubr.f32.mxu0 0.0
  %318 = vmatmul.mubr.f32.gmra.mrb[0].mxu0 %v192
  %v319 = vpop.f32.mrb[0].mxu0
  %v320 = vadd.f32 %v216, %v319
  %v321 = vpop.f32.mrb[0].mxu0
  %322 = vmatprep.mubr.f32.mxu0 0.0
  %323 = vmatmul.mubr.f32.gmra.mrb[0].mxu0 %v193
  %v324 = vpop.f32.mrb[0].mxu0
  %v325 = vadd.f32 %v216, %v324
  %v326 = vpop.f32.mrb[0].mxu0
  %327 = vmatprep.mubr.f32.mxu0 0.0
  %328 = vmatmul.mubr.f32.gmra.mrb[0].mxu0 %v194
  %v329 = vpop.f32.mrb[0].mxu0
  %v330 = vadd.f32 %v216, %v329
  %v331 = vpop.f32.mrb[0].mxu0
  %332 = vdwg.mxu0
  %v333 = vmax.f32 %v285, 0.0
  %v334 = vmax.f32 %v290, 0.0
  %v335 = vmax.f32 %v295, 0.0
  %v336 = vmax.f32 %v300, 0.0
  %v337 = vmax.f32 %v305, 0.0
  %v338 = vmax.f32 %v310, 0.0
  %v339 = vmax.f32 %v315, 0.0
  %v340 = vmax.f32 %v320, 0.0
  %v341 = vmax.f32 %v325, 0.0
  %v342 = vmax.f32 %v330, 0.0
  %v343 = vadd.f32 %v333, %v334
  %v344 = vadd.f32 %v343, %v335
  %v345 = vadd.f32 %v344, %v336
  %v346 = vadd.f32 %v345, %v337
  %v347 = vadd.f32 %v346, %v338
  %v348 = vadd.f32 %v347, %v339
  %v349 = vadd.f32 %v348, %v340
  %v350 = vadd.f32 %v349, %v341
  %v351 = vadd.f32 %v350, %v342
  %v352 = vmul.f32 %v351, 0.1
  %353 = vst [vmem:[%s10] sm:$0xff] %v352
  %v354 = vld [vmem:[%s5] sm:$0xff]
  %v355 = vld [vmem:[%s5 + $0x8] sm:$0xff]
  %v356 = vld [vmem:[%s5 + $0x10] sm:$0xff]
  %v357 = vld [vmem:[%s5 + $0x18] sm:$0xff]
  %v358 = vld [vmem:[%s5 + $0x20] sm:$0xff]
  %v359 = vld [vmem:[%s5 + $0x28] sm:$0xff]
  %v360 = vld [vmem:[%s5 + $0x30] sm:$0xff]
  %v361 = vld [vmem:[%s5 + $0x38] sm:$0xff]
  %v362 = vld [vmem:[%s5 + $0x40] sm:$0xff]
  %v363 = vld [vmem:[%s5 + $0x48] sm:$0xff]
  %v364 = vld [vmem:[%s5 + $0x50] sm:$0xff]
  %v365 = vld [vmem:[%s5 + $0x58] sm:$0xff]
  %v366 = vld [vmem:[%s5 + $0x60] sm:$0xff]
  %v367 = vld [vmem:[%s5 + $0x68] sm:$0xff]
  %v368 = vld [vmem:[%s5 + $0x70] sm:$0xff]
  %v369 = vld [vmem:[%s5 + $0x78] sm:$0xff]
  %v370 = vld [vmem:[%s5 + $0x80] sm:$0xff]
  %v371 = vld [vmem:[%s5 + $0x88] sm:$0xff]
  %v372 = vld [vmem:[%s5 + $0x90] sm:$0xff]
  %v373 = vld [vmem:[%s5 + $0x98] sm:$0xff]
  %v374 = vld [vmem:[%s5 + $0xa0] sm:$0xff]
  %v375 = vld [vmem:[%s5 + $0xa8] sm:$0xff]
  %v376 = vld [vmem:[%s5 + $0xb0] sm:$0xff]
  %v377 = vld [vmem:[%s5 + $0xb8] sm:$0xff]
  %v378 = vld [vmem:[%s5 + $0xc0] sm:$0xff]
  %v379 = vld [vmem:[%s5 + $0xc8] sm:$0xff]
  %v380 = vld [vmem:[%s5 + $0xd0] sm:$0xff]
  %v381 = vld [vmem:[%s5 + $0xd8] sm:$0xff]
  %v382 = vld [vmem:[%s5 + $0xe0] sm:$0xff]
  %v383 = vld [vmem:[%s5 + $0xe8] sm:$0xff]
  %v384 = vld [vmem:[%s5 + $0xf0] sm:$0xff]
  %v385 = vld [vmem:[%s5 + $0xf8] sm:$0xff]
  %v386 = vld [vmem:[%s5 + $0x100] sm:$0xff]
  %v387 = vld [vmem:[%s5 + $0x108] sm:$0xff]
  %v388 = vld [vmem:[%s5 + $0x110] sm:$0xff]
  %v389 = vld [vmem:[%s5 + $0x118] sm:$0xff]
  %v390 = vld [vmem:[%s5 + $0x120] sm:$0xff]
  %v391 = vld [vmem:[%s5 + $0x128] sm:$0xff]
  %v392 = vld [vmem:[%s5 + $0x130] sm:$0xff]
  %v393 = vld [vmem:[%s5 + $0x138] sm:$0xff]
  %v394 = vld [vmem:[%s6] sm:$0xff]
  %v395 = vld [vmem:[%s6 + $0x8] sm:$0xff]
  %v396 = vld [vmem:[%s6 + $0x10] sm:$0xff]
  %v397 = vld [vmem:[%s6 + $0x18] sm:$0xff]
  %v398 = vld [vmem:[%s6 + $0x20] sm:$0xff]
  %v399 = vld [vmem:[%s6 + $0x28] sm:$0xff]
  %v400 = vld [vmem:[%s6 + $0x30] sm:$0xff]
  %v401 = vld [vmem:[%s6 + $0x38] sm:$0xff]
  %v402 = vld [vmem:[%s6 + $0x40] sm:$0xff]
  %v403 = vld [vmem:[%s6 + $0x48] sm:$0xff]
  %v404 = vld [vmem:[%s6 + $0x50] sm:$0xff]
  %v405 = vld [vmem:[%s6 + $0x58] sm:$0xff]
  %v406 = vld [vmem:[%s6 + $0x60] sm:$0xff]
  %v407 = vld [vmem:[%s6 + $0x68] sm:$0xff]
  %v408 = vld [vmem:[%s6 + $0x70] sm:$0xff]
  %v409 = vld [vmem:[%s6 + $0x78] sm:$0xff]
  %v410 = vld [vmem:[%s6 + $0x80] sm:$0xff]
  %v411 = vld [vmem:[%s6 + $0x88] sm:$0xff]
  %v412 = vld [vmem:[%s6 + $0x90] sm:$0xff]
  %v413 = vld [vmem:[%s6 + $0x98] sm:$0xff]
  %v414 = vld [vmem:[%s6 + $0xa0] sm:$0xff]
  %v415 = vld [vmem:[%s6 + $0xa8] sm:$0xff]
  %v416 = vld [vmem:[%s6 + $0xb0] sm:$0xff]
  %v417 = vld [vmem:[%s6 + $0xb8] sm:$0xff]
  %v418 = vld [vmem:[%s6 + $0xc0] sm:$0xff]
  %v419 = vld [vmem:[%s6 + $0xc8] sm:$0xff]
  %v420 = vld [vmem:[%s6 + $0xd0] sm:$0xff]
  %v421 = vld [vmem:[%s6 + $0xd8] sm:$0xff]
  %v422 = vld [vmem:[%s6 + $0xe0] sm:$0xff]
  %v423 = vld [vmem:[%s6 + $0xe8] sm:$0xff]
  %v424 = vld [vmem:[%s6 + $0xf0] sm:$0xff]
  %v425 = vld [vmem:[%s6 + $0xf8] sm:$0xff]
  %v426 = vld [vmem:[%s6 + $0x100] sm:$0xff]
  %v427 = vld [vmem:[%s6 + $0x108] sm:$0xff]
  %v428 = vld [vmem:[%s6 + $0x110] sm:$0xff]
  %v429 = vld [vmem:[%s6 + $0x118] sm:$0xff]
  %v430 = vld [vmem:[%s6 + $0x120] sm:$0xff]
  %v431 = vld [vmem:[%s6 + $0x128] sm:$0xff]
  %v432 = vld [vmem:[%s6 + $0x130] sm:$0xff]
  %v433 = vld [vmem:[%s6 + $0x138] sm:$0xff]
  %v434 = vld [vmem:[%s6 + $0x140] sm:$0xff]
  %v435 = vld [vmem:[%s6 + $0x148] sm:$0xff]
  %v436 = vld [vmem:[%s6 + $0x150] sm:$0xff]
  %v437 = vld [vmem:[%s6 + $0x158] sm:$0xff]
  %v438 = vld [vmem:[%s6 + $0x160] sm:$0xff]
  %v439 = vld [vmem:[%s6 + $0x168] sm:$0xff]
  %v440 = vld [vmem:[%s6 + $0x170] sm:$0xff]
  %v441 = vld [vmem:[%s6 + $0x178] sm:$0xff]
  %v442 = vld [vmem:[%s6 + $0x180] sm:$0xff]
  %v443 = vld [vmem:[%s6 + $0x188] sm:$0xff]
  %v444 = vld [vmem:[%s6 + $0x190] sm:$0xff]
  %v445 = vld [vmem:[%s6 + $0x198] sm:$0xff]
  %v446 = vld [vmem:[%s6 + $0x1a0] sm:$0xff]
  %v447 = vld [vmem:[%s6 + $0x1a8] sm:$0xff]
  %v448 = vld [vmem:[%s6 + $0x1b0] sm:$0xff]
  %v449 = vld [vmem:[%s6 + $0x1b8] sm:$0xff]
  %v450 = vld [vmem:[%s6 + $0x1c0] sm:$0xff]
  %v451 = vld [vmem:[%s6 + $0x1c8] sm:$0xff]
  %v452 = vld [vmem:[%s6 + $0x1d0] sm:$0xff]
  %v453 = vld [vmem:[%s6 + $0x1d8] sm:$0xff]
  %v454 = vld [vmem:[%s6 + $0x1e0] sm:$0xff]
  %v455 = vld [vmem:[%s6 + $0x1e8] sm:$0xff]
  %v456 = vld [vmem:[%s6 + $0x1f0] sm:$0xff]
  %v457 = vld [vmem:[%s6 + $0x1f8] sm:$0xff]
  %v458 = vld [vmem:[%s7] sm:$0x1]
  %v460 = vlaneseq
  %v461 = vshrl.u32 %v460, 7
  %v462 = vsub.s32 0, %v461
  %v463 = vrot.slane %v458, %v462
  %465 = vmatprep.subr.mxu0 0.0
  %466 = vmatpush1.msra.mxu0 %v394
  %467 = vmatprep.subr.mxu0 0.0
  %468 = vmatpush1.msra.mxu0 %v395
  %469 = vmatprep.subr.mxu0 0.0
  %470 = vmatpush1.msra.mxu0 %v396
  %471 = vmatprep.subr.mxu0 0.0
  %472 = vmatpush1.msra.mxu0 %v397
  %473 = vmatprep.subr.mxu0 0.0
  %474 = vmatpush1.msra.mxu0 %v398
  %475 = vmatprep.subr.mxu0 0.0
  %476 = vmatpush1.msra.mxu0 %v399
  %477 = vmatprep.subr.mxu0 0.0
  %478 = vmatpush1.msra.mxu0 %v400
  %479 = vmatprep.subr.mxu0 0.0
  %480 = vmatpush1.msra.mxu0 %v401
  %481 = vmatprep.subr.mxu0 0.0
  %482 = vmatpush1.msra.mxu0 %v402
  %483 = vmatprep.subr.mxu0 0.0
  %484 = vmatpush1.msra.mxu0 %v403
  %485 = vmatprep.subr.mxu0 0.0
  %486 = vmatpush1.msra.mxu0 %v404
  %487 = vmatprep.subr.mxu0 0.0
  %488 = vmatpush1.msra.mxu0 %v405
  %489 = vmatprep.subr.mxu0 0.0
  %490 = vmatpush1.msra.mxu0 %v406
  %491 = vmatprep.subr.mxu0 0.0
  %492 = vmatpush1.msra.mxu0 %v407
  %493 = vmatprep.subr.mxu0 0.0
  %494 = vmatpush1.msra.mxu0 %v408
  %495 = vmatprep.subr.mxu0 0.0
  %496 = vmatpush1.msra.mxu0 %v409
  %497 = vmatprep.subr.mxu0 0.0
  %498 = vmatpush1.msra.mxu0 %v410
  %499 = vmatprep.subr.mxu0 0.0
  %500 = vmatpush1.msra.mxu0 %v411
  %501 = vmatprep.subr.mxu0 0.0
  %502 = vmatpush1.msra.mxu0 %v412
  %503 = vmatprep.subr.mxu0 0.0
  %504 = vmatpush1.msra.mxu0 %v413
  %505 = vmatprep.subr.mxu0 0.0
  %506 = vmatpush1.msra.mxu0 %v414
  %507 = vmatprep.subr.mxu0 0.0
  %508 = vmatpush1.msra.mxu0 %v415
  %509 = vmatprep.subr.mxu0 0.0
  %510 = vmatpush1.msra.mxu0 %v416
  %511 = vmatprep.subr.mxu0 0.0
  %512 = vmatpush1.msra.mxu0 %v417
  %513 = vmatprep.subr.mxu0 0.0
  %514 = vmatpush1.msra.mxu0 %v418
  %515 = vmatprep.subr.mxu0 0.0
  %516 = vmatpush1.msra.mxu0 %v419
  %517 = vmatprep.subr.mxu0 0.0
  %518 = vmatpush1.msra.mxu0 %v420
  %519 = vmatprep.subr.mxu0 0.0
  %520 = vmatpush1.msra.mxu0 %v421
  %521 = vmatprep.subr.mxu0 0.0
  %522 = vmatpush1.msra.mxu0 %v422
  %523 = vmatprep.subr.mxu0 0.0
  %524 = vmatpush1.msra.mxu0 %v423
  %525 = vmatprep.subr.mxu0 0.0
  %526 = vmatpush1.msra.mxu0 %v424
  %527 = vmatprep.subr.mxu0 0.0
  %528 = vmatpush1.msra.mxu0 %v425
  %529 = vmatprep.mubr.f32.mxu0 %v355
  %530 = vmatmul.mubr.f32.gmra.mrb[0].mxu0 %v354
  %v531 = vpop.f32.mrb[0].mxu0
  %v532 = vadd.f32 %v463, %v531
  %v533 = vpop.f32.mrb[0].mxu0
  %534 = vmatprep.mubr.f32.mxu0 %v359
  %535 = vmatmul.mubr.f32.gmra.mrb[0].mxu0 %v358
  %v536 = vpop.f32.mrb[0].mxu0
  %v537 = vadd.f32 %v463, %v536
  %v538 = vpop.f32.mrb[0].mxu0
  %539 = vmatprep.mubr.f32.mxu0 %v363
  %540 = vmatmul.mubr.f32.gmra.mrb[0].mxu0 %v362
  %v541 = vpop.f32.mrb[0].mxu0
  %v542 = vadd.f32 %v463, %v541
  %v543 = vpop.f32.mrb[0].mxu0
  %544 = vmatprep.mubr.f32.mxu0 %v367
  %545 = vmatmul.mubr.f32.gmra.mrb[0].mxu0 %v366
  %v546 = vpop.f32.mrb[0].mxu0
  %v547 = vadd.f32 %v463, %v546
  %v548 = vpop.f32.mrb[0].mxu0
  %549 = vmatprep.mubr.f32.mxu0 %v371
  %550 = vmatmul.mubr.f32.gmra.mrb[0].mxu0 %v370
  %v551 = vpop.f32.mrb[0].mxu0
  %v552 = vadd.f32 %v463, %v551
  %v553 = vpop.f32.mrb[0].mxu0
  %554 = vmatprep.mubr.f32.mxu0 %v375
  %555 = vmatmul.mubr.f32.gmra.mrb[0].mxu0 %v374
  %v556 = vpop.f32.mrb[0].mxu0
  %v557 = vadd.f32 %v463, %v556
  %v558 = vpop.f32.mrb[0].mxu0
  %559 = vmatprep.mubr.f32.mxu0 %v379
  %560 = vmatmul.mubr.f32.gmra.mrb[0].mxu0 %v378
  %v561 = vpop.f32.mrb[0].mxu0
  %v562 = vadd.f32 %v463, %v561
  %v563 = vpop.f32.mrb[0].mxu0
  %564 = vmatprep.mubr.f32.mxu0 %v383
  %565 = vmatmul.mubr.f32.gmra.mrb[0].mxu0 %v382
  %v566 = vpop.f32.mrb[0].mxu0
  %v567 = vadd.f32 %v463, %v566
  %v568 = vpop.f32.mrb[0].mxu0
  %569 = vmatprep.mubr.f32.mxu0 %v387
  %570 = vmatmul.mubr.f32.gmra.mrb[0].mxu0 %v386
  %v571 = vpop.f32.mrb[0].mxu0
  %v572 = vadd.f32 %v463, %v571
  %v573 = vpop.f32.mrb[0].mxu0
  %574 = vmatprep.mubr.f32.mxu0 %v391
  %575 = vmatmul.mubr.f32.gmra.mrb[0].mxu0 %v390
  %v576 = vpop.f32.mrb[0].mxu0
  %v577 = vadd.f32 %v463, %v576
  %v578 = vpop.f32.mrb[0].mxu0
  %579 = vdwg.mxu0
  %580 = vmatprep.subr.mxu0 0.0
  %581 = vmatpush1.msra.mxu0 %v426
  %582 = vmatprep.subr.mxu0 0.0
  %583 = vmatpush1.msra.mxu0 %v427
  %584 = vmatprep.subr.mxu0 0.0
  %585 = vmatpush1.msra.mxu0 %v428
  %586 = vmatprep.subr.mxu0 0.0
  %587 = vmatpush1.msra.mxu0 %v429
  %588 = vmatprep.subr.mxu0 0.0
  %589 = vmatpush1.msra.mxu0 %v430
  %590 = vmatprep.subr.mxu0 0.0
  %591 = vmatpush1.msra.mxu0 %v431
  %592 = vmatprep.subr.mxu0 0.0
  %593 = vmatpush1.msra.mxu0 %v432
  %594 = vmatprep.subr.mxu0 0.0
  %595 = vmatpush1.msra.mxu0 %v433
  %596 = vmatprep.subr.mxu0 0.0
  %597 = vmatpush1.msra.mxu0 %v434
  %598 = vmatprep.subr.mxu0 0.0
  %599 = vmatpush1.msra.mxu0 %v435
  %600 = vmatprep.subr.mxu0 0.0
  %601 = vmatpush1.msra.mxu0 %v436
  %602 = vmatprep.subr.mxu0 0.0
  %603 = vmatpush1.msra.mxu0 %v437
  %604 = vmatprep.subr.mxu0 0.0
  %605 = vmatpush1.msra.mxu0 %v438
  %606 = vmatprep.subr.mxu0 0.0
  %607 = vmatpush1.msra.mxu0 %v439
  %608 = vmatprep.subr.mxu0 0.0
  %609 = vmatpush1.msra.mxu0 %v440
  %610 = vmatprep.subr.mxu0 0.0
  %611 = vmatpush1.msra.mxu0 %v441
  %612 = vmatprep.subr.mxu0 0.0
  %613 = vmatpush1.msra.mxu0 %v442
  %614 = vmatprep.subr.mxu0 0.0
  %615 = vmatpush1.msra.mxu0 %v443
  %616 = vmatprep.subr.mxu0 0.0
  %617 = vmatpush1.msra.mxu0 %v444
  %618 = vmatprep.subr.mxu0 0.0
  %619 = vmatpush1.msra.mxu0 %v445
  %620 = vmatprep.subr.mxu0 0.0
  %621 = vmatpush1.msra.mxu0 %v446
  %622 = vmatprep.subr.mxu0 0.0
  %623 = vmatpush1.msra.mxu0 %v447
  %624 = vmatprep.subr.mxu0 0.0
  %625 = vmatpush1.msra.mxu0 %v448
  %626 = vmatprep.subr.mxu0 0.0
  %627 = vmatpush1.msra.mxu0 %v449
  %628 = vmatprep.subr.mxu0 0.0
  %629 = vmatpush1.msra.mxu0 %v450
  %630 = vmatprep.subr.mxu0 0.0
  %631 = vmatpush1.msra.mxu0 %v451
  %632 = vmatprep.subr.mxu0 0.0
  %633 = vmatpush1.msra.mxu0 %v452
  %634 = vmatprep.subr.mxu0 0.0
  %635 = vmatpush1.msra.mxu0 %v453
  %636 = vmatprep.subr.mxu0 0.0
  %637 = vmatpush1.msra.mxu0 %v454
  %638 = vmatprep.subr.mxu0 0.0
  %639 = vmatpush1.msra.mxu0 %v455
  %640 = vmatprep.subr.mxu0 0.0
  %641 = vmatpush1.msra.mxu0 %v456
  %642 = vmatprep.subr.mxu0 0.0
  %643 = vmatpush1.msra.mxu0 %v457
  %644 = vmatprep.mubr.f32.mxu0 %v357
  %645 = vmatmul.mubr.f32.gmra.mrb[0].mxu0 %v356
  %v646 = vpop.f32.mrb[0].mxu0
  %v647 = vadd.f32 %v532, %v646
  %v648 = vpop.f32.mrb[0].mxu0
  %649 = vmatprep.mubr.f32.mxu0 %v361
  %650 = vmatmul.mubr.f32.gmra.mrb[0].mxu0 %v360
  %v651 = vpop.f32.mrb[0].mxu0
  %v652 = vadd.f32 %v537, %v651
  %v653 = vpop.f32.mrb[0].mxu0
  %654 = vmatprep.mubr.f32.mxu0 %v365
  %655 = vmatmul.mubr.f32.gmra.mrb[0].mxu0 %v364
  %v656 = vpop.f32.mrb[0].mxu0
  %v657 = vadd.f32 %v542, %v656
  %v658 = vpop.f32.mrb[0].mxu0
  %659 = vmatprep.mubr.f32.mxu0 %v369
  %660 = vmatmul.mubr.f32.gmra.mrb[0].mxu0 %v368
  %v661 = vpop.f32.mrb[0].mxu0
  %v662 = vadd.f32 %v547, %v661
  %v663 = vpop.f32.mrb[0].mxu0
  %664 = vmatprep.mubr.f32.mxu0 %v373
  %665 = vmatmul.mubr.f32.gmra.mrb[0].mxu0 %v372
  %v666 = vpop.f32.mrb[0].mxu0
  %v667 = vadd.f32 %v552, %v666
  %v668 = vpop.f32.mrb[0].mxu0
  %669 = vmatprep.mubr.f32.mxu0 %v377
  %670 = vmatmul.mubr.f32.gmra.mrb[0].mxu0 %v376
  %v671 = vpop.f32.mrb[0].mxu0
  %v672 = vadd.f32 %v557, %v671
  %v673 = vpop.f32.mrb[0].mxu0
  %674 = vmatprep.mubr.f32.mxu0 %v381
  %675 = vmatmul.mubr.f32.gmra.mrb[0].mxu0 %v380
  %v676 = vpop.f32.mrb[0].mxu0
  %v677 = vadd.f32 %v562, %v676
  %v678 = vpop.f32.mrb[0].mxu0
  %679 = vmatprep.mubr.f32.mxu0 %v385
  %680 = vmatmul.mubr.f32.gmra.mrb[0].mxu0 %v384
  %v681 = vpop.f32.mrb[0].mxu0
  %v682 = vadd.f32 %v567, %v681
  %v683 = vpop.f32.mrb[0].mxu0
  %684 = vmatprep.mubr.f32.mxu0 %v389
  %685 = vmatmul.mubr.f32.gmra.mrb[0].mxu0 %v388
  %v686 = vpop.f32.mrb[0].mxu0
  %v687 = vadd.f32 %v572, %v686
  %v688 = vpop.f32.mrb[0].mxu0
  %689 = vmatprep.mubr.f32.mxu0 %v393
  %690 = vmatmul.mubr.f32.gmra.mrb[0].mxu0 %v392
  %v691 = vpop.f32.mrb[0].mxu0
  %v692 = vadd.f32 %v577, %v691
  %v693 = vpop.f32.mrb[0].mxu0
  %694 = vdwg.mxu0
  %v695 = vmax.f32 %v647, 0.0
  %v696 = vmax.f32 %v652, 0.0
  %v697 = vmax.f32 %v657, 0.0
  %v698 = vmax.f32 %v662, 0.0
  %v699 = vmax.f32 %v667, 0.0
  %v700 = vmax.f32 %v672, 0.0
  %v701 = vmax.f32 %v677, 0.0
  %v702 = vmax.f32 %v682, 0.0
  %v703 = vmax.f32 %v687, 0.0
  %v704 = vmax.f32 %v692, 0.0
  %v705 = vld [vmem:[%s8] sm:$0xff]
  %v706 = vld [vmem:[%s8 + $0x8] sm:$0xff]
  %v707 = vld [vmem:[%s8 + $0x10] sm:$0xff]
  %v708 = vld [vmem:[%s8 + $0x18] sm:$0xff]
  %v709 = vld [vmem:[%s8 + $0x20] sm:$0xff]
  %v710 = vld [vmem:[%s8 + $0x28] sm:$0xff]
  %v711 = vld [vmem:[%s8 + $0x30] sm:$0xff]
  %v712 = vld [vmem:[%s8 + $0x38] sm:$0xff]
  %v713 = vld [vmem:[%s8 + $0x40] sm:$0xff]
  %v714 = vld [vmem:[%s8 + $0x48] sm:$0xff]
  %v715 = vld [vmem:[%s8 + $0x50] sm:$0xff]
  %v716 = vld [vmem:[%s8 + $0x58] sm:$0xff]
  %v717 = vld [vmem:[%s8 + $0x60] sm:$0xff]
  %v718 = vld [vmem:[%s8 + $0x68] sm:$0xff]
  %v719 = vld [vmem:[%s8 + $0x70] sm:$0xff]
  %v720 = vld [vmem:[%s8 + $0x78] sm:$0xff]
  %v721 = vld [vmem:[%s9] sm:$0x1]
  %v723 = vlaneseq
  %v724 = vshrl.u32 %v723, 7
  %v725 = vsub.s32 0, %v724
  %v726 = vrot.slane %v721, %v725
  %728 = vmatprep.subr.mxu0 0.0
  %729 = vmatpush1.msra.mxu0 %v705
  %730 = vmatprep.subr.mxu0 0.0
  %731 = vmatpush1.msra.mxu0 %v706
  %732 = vmatprep.subr.mxu0 0.0
  %733 = vmatpush1.msra.mxu0 %v707
  %734 = vmatprep.subr.mxu0 0.0
  %735 = vmatpush1.msra.mxu0 %v708
  %736 = vmatprep.subr.mxu0 0.0
  %737 = vmatpush1.msra.mxu0 %v709
  %738 = vmatprep.subr.mxu0 0.0
  %739 = vmatpush1.msra.mxu0 %v710
  %740 = vmatprep.subr.mxu0 0.0
  %741 = vmatpush1.msra.mxu0 %v711
  %742 = vmatprep.subr.mxu0 0.0
  %743 = vmatpush1.msra.mxu0 %v712
  %744 = vmatprep.subr.mxu0 0.0
  %745 = vmatpush1.msra.mxu0 %v713
  %746 = vmatprep.subr.mxu0 0.0
  %747 = vmatpush1.msra.mxu0 %v714
  %748 = vmatprep.subr.mxu0 0.0
  %749 = vmatpush1.msra.mxu0 %v715
  %750 = vmatprep.subr.mxu0 0.0
  %751 = vmatpush1.msra.mxu0 %v716
  %752 = vmatprep.subr.mxu0 0.0
  %753 = vmatpush1.msra.mxu0 %v717
  %754 = vmatprep.subr.mxu0 0.0
  %755 = vmatpush1.msra.mxu0 %v718
  %756 = vmatprep.subr.mxu0 0.0
  %757 = vmatpush1.msra.mxu0 %v719
  %758 = vmatprep.subr.mxu0 0.0
  %759 = vmatpush1.msra.mxu0 %v720
  %760 = vmatprep.subr.mxu0 0.0
  %761 = vmatpush1.msra.mxu0 0.0
  %762 = vmatprep.subr.mxu0 0.0
  %763 = vmatpush1.msra.mxu0 0.0
  %764 = vmatprep.subr.mxu0 0.0
  %765 = vmatpush1.msra.mxu0 0.0
  %766 = vmatprep.subr.mxu0 0.0
  %767 = vmatpush1.msra.mxu0 0.0
  %768 = vmatprep.subr.mxu0 0.0
  %769 = vmatpush1.msra.mxu0 0.0
  %770 = vmatprep.subr.mxu0 0.0
  %771 = vmatpush1.msra.mxu0 0.0
  %772 = vmatprep.subr.mxu0 0.0
  %773 = vmatpush1.msra.mxu0 0.0
  %774 = vmatprep.subr.mxu0 0.0
  %775 = vmatpush1.msra.mxu0 0.0
  %776 = vmatprep.subr.mxu0 0.0
  %777 = vmatpush1.msra.mxu0 0.0
  %778 = vmatprep.subr.mxu0 0.0
  %779 = vmatpush1.msra.mxu0 0.0
  %780 = vmatprep.subr.mxu0 0.0
  %781 = vmatpush1.msra.mxu0 0.0
  %782 = vmatprep.subr.mxu0 0.0
  %783 = vmatpush1.msra.mxu0 0.0
  %784 = vmatprep.subr.mxu0 0.0
  %785 = vmatpush1.msra.mxu0 0.0
  %786 = vmatprep.subr.mxu0 0.0
  %787 = vmatpush1.msra.mxu0 0.0
  %788 = vmatprep.subr.mxu0 0.0
  %789 = vmatpush1.msra.mxu0 0.0
  %790 = vmatprep.subr.mxu0 0.0
  %791 = vmatpush1.msra.mxu0 0.0
  %792 = vmatprep.mubr.f32.mxu0 0.0
  %793 = vmatmul.mubr.f32.gmra.mrb[0].mxu0 %v695
  %v794 = vpop.f32.mrb[0].mxu0
  %v795 = vadd.f32 %v726, %v794
  %v796 = vpop.f32.mrb[0].mxu0
  %797 = vmatprep.mubr.f32.mxu0 0.0
  %798 = vmatmul.mubr.f32.gmra.mrb[0].mxu0 %v696
  %v799 = vpop.f32.mrb[0].mxu0
  %v800 = vadd.f32 %v726, %v799
  %v801 = vpop.f32.mrb[0].mxu0
  %802 = vmatprep.mubr.f32.mxu0 0.0
  %803 = vmatmul.mubr.f32.gmra.mrb[0].mxu0 %v697
  %v804 = vpop.f32.mrb[0].mxu0
  %v805 = vadd.f32 %v726, %v804
  %v806 = vpop.f32.mrb[0].mxu0
  %807 = vmatprep.mubr.f32.mxu0 0.0
  %808 = vmatmul.mubr.f32.gmra.mrb[0].mxu0 %v698
  %v809 = vpop.f32.mrb[0].mxu0
  %v810 = vadd.f32 %v726, %v809
  %v811 = vpop.f32.mrb[0].mxu0
  %812 = vmatprep.mubr.f32.mxu0 0.0
  %813 = vmatmul.mubr.f32.gmra.mrb[0].mxu0 %v699
  %v814 = vpop.f32.mrb[0].mxu0
  %v815 = vadd.f32 %v726, %v814
  %v816 = vpop.f32.mrb[0].mxu0
  %817 = vmatprep.mubr.f32.mxu0 0.0
  %818 = vmatmul.mubr.f32.gmra.mrb[0].mxu0 %v700
  %v819 = vpop.f32.mrb[0].mxu0
  %v820 = vadd.f32 %v726, %v819
  %v821 = vpop.f32.mrb[0].mxu0
  %822 = vmatprep.mubr.f32.mxu0 0.0
  %823 = vmatmul.mubr.f32.gmra.mrb[0].mxu0 %v701
  %v824 = vpop.f32.mrb[0].mxu0
  %v825 = vadd.f32 %v726, %v824
  %v826 = vpop.f32.mrb[0].mxu0
  %827 = vmatprep.mubr.f32.mxu0 0.0
  %828 = vmatmul.mubr.f32.gmra.mrb[0].mxu0 %v702
  %v829 = vpop.f32.mrb[0].mxu0
  %v830 = vadd.f32 %v726, %v829
  %v831 = vpop.f32.mrb[0].mxu0
  %832 = vmatprep.mubr.f32.mxu0 0.0
  %833 = vmatmul.mubr.f32.gmra.mrb[0].mxu0 %v703
  %v834 = vpop.f32.mrb[0].mxu0
  %v835 = vadd.f32 %v726, %v834
  %v836 = vpop.f32.mrb[0].mxu0
  %837 = vmatprep.mubr.f32.mxu0 0.0
  %838 = vmatmul.mubr.f32.gmra.mrb[0].mxu0 %v704
  %v839 = vpop.f32.mrb[0].mxu0
  %v840 = vadd.f32 %v726, %v839
  %v841 = vpop.f32.mrb[0].mxu0
  %842 = vdwg.mxu0
  %v843 = vmax.f32 %v795, 0.0
  %v844 = vmax.f32 %v800, 0.0
  %v845 = vmax.f32 %v805, 0.0
  %v846 = vmax.f32 %v810, 0.0
  %v847 = vmax.f32 %v815, 0.0
  %v848 = vmax.f32 %v820, 0.0
  %v849 = vmax.f32 %v825, 0.0
  %v850 = vmax.f32 %v830, 0.0
  %v851 = vmax.f32 %v835, 0.0
  %v852 = vmax.f32 %v840, 0.0
  %v853 = vadd.f32 %v843, %v844
  %v854 = vadd.f32 %v853, %v845
  %v855 = vadd.f32 %v854, %v846
  %v856 = vadd.f32 %v855, %v847
  %v857 = vadd.f32 %v856, %v848
  %v858 = vadd.f32 %v857, %v849
  %v859 = vadd.f32 %v858, %v850
  %v860 = vadd.f32 %v859, %v851
  %v861 = vadd.f32 %v860, %v852
  %v862 = vmul.f32 %v861, 0.1
  %863 = vst [vmem:[%s11] sm:$0xff] %v862
  // Predicated region
  $region42: #{classification_net_forward.1} parent=0 // pred_check
    _
  $region43: #{classification_net_forward.1} parent=0 // pred_check_branch
    %865 = sbr.rel (0) target = $region45
  $region44: #{classification_net_forward.1} parent=0 // pred_region
    _
  $region45: #{classification_net_forward.1} parent=0 // pred_fallthru
    _
  // Predicated region
  $region46: #{classification_net_forward.1} parent=0 // pred_check
    _
  $region47: #{classification_net_forward.1} parent=0 // pred_check_branch
    %867 = sbr.rel (0) target = $region49
  $region48: #{classification_net_forward.1} parent=0 // pred_region
    _
  $region49: #{classification_net_forward.1} parent=0 // pred_fallthru
    _
  // Predicated region
  $region50: #{classification_net_forward.1} parent=0 // pred_check
    _
  $region51: #{classification_net_forward.1} parent=0 // pred_check_branch
    %869 = sbr.rel (0) target = $region53
  $region52: #{classification_net_forward.1} parent=0 // pred_region
    _
  $region53: #{classification_net_forward.1} parent=0 // pred_fallthru
    _
  // Predicated region
  $region54: #{classification_net_forward.1} parent=0 // pred_check
    _
  $region55: #{classification_net_forward.1} parent=0 // pred_check_branch
    %871 = sbr.rel (0) target = $region57
  $region56: #{classification_net_forward.1} parent=0 // pred_region
    _
  $region57: #{classification_net_forward.1} parent=0 // pred_fallthru
    _

</llo_original>
